<compile_context>
chip_gen: v6e
topology: v6e:2x2x1
jax: 0.10.0
libtpu: 0.0.40
codegen_flags: <defaults>
</compile_context>

<pallas_src>
import numpy as np

import jax
import jax.numpy as jnp
from jax.experimental import pallas as pl
from jax.experimental.pallas import tpu as pltpu


# ---------------------------------------------------------------------------
# Pallas kernel: fused score projection + tanh + score-gating
# ---------------------------------------------------------------------------
def topk_pool_kernel(x_ref, w_ref, gated_ref, score_ref):
    # x_ref:     (TM, Dp)  node-feature row tile (f32, feature dim padded to 128k)
    # w_ref:     (1, Dp)   attention weight row, pre-divided by ||w||_2
    # gated_ref: (TM, Dp)  output: x * tanh(x.w / ||w||)   (lane-dense store)
    # score_ref: (TM, 1)   output: per-node score
    x = x_ref[...]
    proj = jnp.sum(x * w_ref[...], axis=1, keepdims=True)   # VPU mul + XLU reduce
    s = jnp.tanh(proj)                                       # EUP
    score_ref[...] = s
    gated_ref[...] = (x * s).astype(gated_ref.dtype)         # VPU gate


def topk_score_gate(x, weight, *, tm_max=256):
    """Pallas-backed: returns (x * score[:, None], score) for ALL nodes.

    Gating all nodes then gathering the top-k equals gathering then gating,
    so the data-dependent selection can stay outside the kernel.
    """
    n, d = x.shape
    x = x.astype(jnp.float32)
    w = weight.reshape(1, d).astype(jnp.float32)

    # Hoist the weight normalization out of the kernel (applied once).
    inv_norm = 1.0 / jnp.sqrt(jnp.sum(w * w))
    w_scaled = w * inv_norm

    # Pad feature dim to a multiple of 128 (lane-dense output stores) and the
    # node dim to a multiple of the row tile (multiple of 8 sublanes).
    dp = ((d + 127) // 128) * 128
    n8 = ((n + 7) // 8) * 8
    tm = min(tm_max, n8)
    n_pad = ((n8 + tm - 1) // tm) * tm

    x_pad = jnp.zeros((n_pad, dp), jnp.float32).at[:n, :d].set(x)
    w_pad = jnp.zeros((1, dp), jnp.float32).at[:, :d].set(w_scaled)

    grid = (pl.cdiv(n_pad, tm),)

    gated, score = pl.pallas_call(
        topk_pool_kernel,
        out_shape=(
            jax.ShapeDtypeStruct((n_pad, dp), jnp.float32),
            jax.ShapeDtypeStruct((n_pad, 1), jnp.float32),
        ),
        grid_spec=pltpu.PrefetchScalarGridSpec(
            num_scalar_prefetch=0,
            grid=grid,
            in_specs=[
                pl.BlockSpec((tm, dp), lambda i: (i, 0)),   # x row tile
                pl.BlockSpec((1, dp), lambda i: (0, 0)),    # normalized weight row
            ],
            out_specs=[
                pl.BlockSpec((tm, dp), lambda i: (i, 0)),   # gated x (lane-dense)
                pl.BlockSpec((tm, 1), lambda i: (i, 0)),    # scores
            ],
        ),
        compiler_params=pltpu.CompilerParams(
            dimension_semantics=("parallel",),              # row tiles -> 2 TCs on v7x
        ),
    )(x_pad, w_pad)

    return gated[:n, :d], score[:n, 0]


# ---------------------------------------------------------------------------
# Host-side glue: per-graph top-k selection and edge filtering.
# TODO(synk): per-graph top-k with ratio and filter_adj produce data-dependent
# output shapes (variable #nodes / #edges); no static-shape Pallas equivalent,
# so they are done with NumPy on host exactly following PyG semantics.
# ---------------------------------------------------------------------------
def _topk_perm(score, batch, ratio):
    score = np.asarray(score)
    batch = np.asarray(batch)
    if batch.size == 0:
        return np.zeros((0,), np.int64)
    num_graphs = int(batch.max()) + 1
    chunks = []
    for g in range(num_graphs):
        idx = np.nonzero(batch == g)[0]
        if idx.size == 0:
            continue
        k = int(np.ceil(ratio * idx.size))
        order = idx[np.argsort(-score[idx], kind="stable")]
        chunks.append(order[:k])
    return np.concatenate(chunks) if chunks else np.zeros((0,), np.int64)


def _filter_adj(edge_index, edge_attr, perm, num_nodes):
    ei = np.asarray(edge_index)
    perm = np.asarray(perm)
    remap = np.full((num_nodes,), -1, dtype=np.int64)
    remap[perm] = np.arange(perm.size)
    row, col = remap[ei[0]], remap[ei[1]]
    keep = (row >= 0) & (col >= 0)
    new_ei = np.stack([row[keep], col[keep]], axis=0).astype(np.int32)
    new_attr = None if edge_attr is None else np.asarray(edge_attr)[keep]
    return (jnp.asarray(new_ei),
            None if new_attr is None else jnp.asarray(new_attr))


def topk_pooling(x, edge_index, edge_attr, batch, weight, ratio):
    """Full TopKPooling forward. Returns (x, edge_index, edge_attr, batch,
    perm, score[perm]) with PyG semantics."""
    gated, score = topk_score_gate(x, weight)          # Pallas hot path
    perm = _topk_perm(score, batch, ratio)
    x_out = gated[perm]
    batch_out = jnp.asarray(np.asarray(batch)[perm])
    ei_out, ea_out = _filter_adj(edge_index, edge_attr, perm, x.shape[0])
    return x_out, ei_out, ea_out, batch_out, jnp.asarray(perm, jnp.int32), score[perm]


# ---------------------------------------------------------------------------
# Pure-JAX reference (no Pallas) mirroring PyG TopKPooling.
# ---------------------------------------------------------------------------
def topk_pooling_ref(x, edge_index, edge_attr, batch, weight, ratio):
    w = weight.reshape(-1).astype(jnp.float32)
    score = jnp.tanh((x.astype(jnp.float32) @ w) / jnp.sqrt(jnp.sum(w * w)))
    perm = _topk_perm(score, batch, ratio)
    x_out = x[perm] * score[perm][:, None]
    batch_out = jnp.asarray(np.asarray(batch)[perm])
    ei_out, ea_out = _filter_adj(edge_index, edge_attr, perm, x.shape[0])
    return x_out, ei_out, ea_out, batch_out, jnp.asarray(perm, jnp.int32), score[perm]


if __name__ == "__main__":
    key = jax.random.PRNGKey(0)
    k_x, k_ei, k_ew, k_w = jax.random.split(key, 4)

    N, E, DIM_IN = 24, 60, 64          # 2 graphs of 12 nodes each
    RATIO = 0.5                        # cfg.gnn.pool_ratio

    x = jax.random.normal(k_x, (N, DIM_IN), dtype=jnp.float32)
    edge_index = jax.random.randint(k_ei, (2, E), 0, N, dtype=jnp.int32)
    edge_attr = jax.random.uniform(k_ew, (E,), dtype=jnp.float32)
    batch = jnp.concatenate([jnp.zeros((12,), jnp.int32),
                             jnp.ones((12,), jnp.int32)])

    # TopKPooling attention weight (PyG: shape (1, in_channels)).
    scale = 1.0 / jnp.sqrt(DIM_IN)
    weight = jax.random.uniform(k_w, (1, DIM_IN), jnp.float32, -scale, scale)

    out = topk_pooling(x, edge_index, edge_attr, batch, weight, RATIO)
    x_out, ei_out, ea_out, b_out, perm, score_perm = out
    x_out = jax.block_until_ready(x_out)

    ref = topk_pooling_ref(x, edge_index, edge_attr, batch, weight, RATIO)
    rx, rei, rea, rb, rperm, rscore = ref

    assert x_out.shape == rx.shape
    assert jnp.allclose(x_out, rx, atol=1e-5, rtol=1e-5)
    assert jnp.allclose(score_perm, rscore, atol=1e-5, rtol=1e-5)
    assert np.array_equal(np.asarray(perm), np.asarray(rperm))
    assert np.array_equal(np.asarray(ei_out), np.asarray(rei))
    assert jnp.allclose(ea_out, rea)
    assert np.array_equal(np.asarray(b_out), np.asarray(rb))

    print("KERNEL_OK")
</pallas_src>

<mosaic_0001>
module attributes {stable_mosaic.version = 11 : i64} {
  func.func @topk_pool_kernel(%arg0: i32, %arg1: memref<24x128xf32, #tpu.memory_space<vmem>>, %arg2: memref<1x128xf32, #tpu.memory_space<vmem>>, %arg3: memref<24x128xf32, #tpu.memory_space<vmem>>, %arg4: memref<24x1xf32, #tpu.memory_space<vmem>>) attributes {dimension_semantics = [#tpu.dimension_semantics<parallel>], iteration_bounds = array<i64: 1>, scalar_prefetch = 0 : i64, scratch_operands = 0 : i64, tpu.core_type = #tpu.core_type<tc>, window_params = [{transform_indices = @transform_0, window_bounds = array<i64: 24, 128>}, {pipeline_mode = #tpu.pipeline_mode<synchronous>, transform_indices = @transform_1, window_bounds = array<i64: 1, 128>}, {transform_indices = @transform_2, window_bounds = array<i64: 24, 128>}, {transform_indices = @transform_3, window_bounds = array<i64: 24, 1>}]} {
    %c0 = arith.constant 0 : index
    %c0_0 = arith.constant 0 : index
    %0 = vector.load %arg1[%c0, %c0_0] : memref<24x128xf32, #tpu.memory_space<vmem>>, vector<24x128xf32>
    %c0_1 = arith.constant 0 : index
    %c0_2 = arith.constant 0 : index
    %1 = vector.load %arg2[%c0_1, %c0_2] : memref<1x128xf32, #tpu.memory_space<vmem>>, vector<1x128xf32>
    %2 = vector.broadcast %1 : vector<1x128xf32> to vector<24x128xf32>
    %3 = arith.mulf %0, %2 : vector<24x128xf32>
    %cst = arith.constant dense<0.000000e+00> : vector<24xf32>
    %4 = vector.multi_reduction <add>, %3, %cst [1] : vector<24x128xf32> to vector<24xf32>
    %5 = vector.shape_cast %4 : vector<24xf32> to vector<24x1xf32>
    %6 = math.tanh %5 : vector<24x1xf32>
    %c0_3 = arith.constant 0 : index
    %c0_4 = arith.constant 0 : index
    %7 = vector.load %arg4[%c0_3, %c0_4] : memref<24x1xf32, #tpu.memory_space<vmem>>, vector<24x1xf32>
    tpu.vector_store %arg4[%c0_3, %c0_4], %6 {strides = array<i32>} : memref<24x1xf32, #tpu.memory_space<vmem>>, vector<24x1xf32>,
    %8 = vector.broadcast %6 : vector<24x1xf32> to vector<24x128xf32>
    %9 = arith.mulf %0, %8 : vector<24x128xf32>
    %c0_5 = arith.constant 0 : index
    %c0_6 = arith.constant 0 : index
    %10 = vector.load %arg3[%c0_5, %c0_6] : memref<24x128xf32, #tpu.memory_space<vmem>>, vector<24x128xf32>
    tpu.vector_store %arg3[%c0_5, %c0_6], %9 {strides = array<i32>} : memref<24x128xf32, #tpu.memory_space<vmem>>, vector<24x128xf32>,
    return
  }
  func.func @transform_0(%arg0: i32) -> (i32, i32) {
    %c0_i32 = arith.constant 0 : i32
    %c0_i32_0 = arith.constant 0 : i32
    return %arg0, %c0_i32 : i32, i32
  }
  func.func @transform_1(%arg0: i32) -> (i32, i32) {
    %c0_i32 = arith.constant 0 : i32
    %c0_i32_0 = arith.constant 0 : i32
    %c0_i32_1 = arith.constant 0 : i32
    return %c0_i32, %c0_i32_0 : i32, i32
  }
  func.func @transform_2(%arg0: i32) -> (i32, i32) {
    %c0_i32 = arith.constant 0 : i32
    %c0_i32_0 = arith.constant 0 : i32
    return %arg0, %c0_i32 : i32, i32
  }
  func.func @transform_3(%arg0: i32) -> (i32, i32) {
    %c0_i32 = arith.constant 0 : i32
    %c0_i32_0 = arith.constant 0 : i32
    return %arg0, %c0_i32 : i32, i32
  }
}

</mosaic_0001>

<llo_original>
// kernel: tpu_custom_call.1
$region0: #{tpu_custom_call.1}
  #allocation0 [shape = 'u32[]', space=smem, size = 0x4, offset = 0x4, fixed_abs, tag = 'smem constant byte address 0x4 - core index']
  #allocation1 [shape = 'u32[144,128]{1,0:T(1,128)}', space=vmem, size = 0x12000, scoped, tag = 'internal scratch']
  %s0 = inlined_call_operand.hbm [shape: f32[24,128], index: 0, kind: input, shape index: {}]
  %s1 = inlined_call_operand.vmem [shape: f32[1,128], index: 1, kind: input, shape index: {}]
  %s2 = inlined_call_operand.hbm [shape: f32[24,128], index: 2, kind: output, shape index: {0}]
  %s3 = inlined_call_operand.vmem [shape: f32[24,1], index: 3, kind: output, shape index: {1}]
  %4 = xla_tuple %s2, %s3
  %s5 = sld [smem:[#allocation0]]
  $region30: #{tpu_custom_call.1} parent=0
    _
  %s7 = ssub.s32 1, %s5
  %s8 = scalar_select 0, %s7, %s5
  $region1: #{tpu_custom_call.1} parent=0
    #allocation2 [shape = 'u8[12288]{0}', space=vmem, size = 0x3000, scoped, tag = 'input window, operand 0, single buffered']
    #allocation3 [shape = 's32[1]{0}', space=sflag, size = 0x4, scoped, tag = 'scoped memory for tpu_custom_call.1']
    #allocation4 [shape = 's32[1]{0}', space=sflag, size = 0x4, scoped, tag = 'scoped memory for tpu_custom_call.1']
    #allocation5 [shape = 'u8[12288]{0}', space=vmem, size = 0x3000, scoped, tag = 'output window, operand 0, single buffered']
    %9 = vsyncpa [#allocation3], 0
    %10 = vsyncpa [#allocation4], 0
    // Predicated region
    $region2: #{tpu_custom_call.1} parent=1 // pred_check
      _
    $region3: #{tpu_custom_call.1} parent=1 // pred_check_branch
      %12 = sbr.rel (0) target = $region5
    $region4: #{tpu_custom_call.1} parent=1 // pred_region
      %s14 = ssub.s32 384, 384
      %15 = vsyncadd [#allocation3], %s14
      %s16 = sshll.u32 [#allocation2], 4
      %s17 = int_to_ptr.vmem [resolvable:$true] %s16
      %22 = dma.hbm_to_vmem [thread:$0]  %s0, 384, %s17, [#allocation3], 128, 128, 8
    $region5: #{tpu_custom_call.1} parent=1 // pred_fallthru
      _
    // Predicated region
    $region6: #{tpu_custom_call.1} parent=1 // pred_check
      _
    $region7: #{tpu_custom_call.1} parent=1 // pred_check_branch
      %24 = sbr.rel (0) target = $region9
    $region8: #{tpu_custom_call.1} parent=1 // pred_region
      _
    $region9: #{tpu_custom_call.1} parent=1 // pred_fallthru
      _
    // Predicated region
    $region10: #{tpu_custom_call.1} parent=1 // pred_check
      _
    $region11: #{tpu_custom_call.1} parent=1 // pred_check_branch
      %26 = sbr.rel (0) target = $region13
    $region12: #{tpu_custom_call.1} parent=1 // pred_region
      %27 = dma.done [#allocation3], 384
    $region13: #{tpu_custom_call.1} parent=1 // pred_fallthru
      _
    %v28 = vld [vmem:[#allocation2] sm:$0xff]
    %v29 = vld [vmem:[#allocation2 + $0x8] sm:$0xff]
    %v30 = vld [vmem:[#allocation2 + $0x10] sm:$0xff]
    %v31 = vld [vmem:[%s1] sm:$0x1]
    %v33 = vlaneseq
    %v34 = vshrl.u32 %v33, 7
    %v35 = vsub.s32 0, %v34
    %v36 = vrot.slane %v31, %v35
    %v38 = vmul.f32 %v28, %v36
    %v39 = vmul.f32 %v29, %v36
    %v40 = vmul.f32 %v30, %v36
    %41 = vadd.xlane.f32.xlu0 %v38
    %v42 = vpop.xlane.xlu0 %41
    %43 = vadd.xlane.f32.xlu0 %v39
    %v44 = vpop.xlane.xlu0 %43
    %45 = vadd.xlane.f32.xlu0 %v40
    %v46 = vpop.xlane.xlu0 %45
    %v47 = vtanh.pop %v42
    %v48 = vtanh.pop %v44
    %v49 = vtanh.pop %v46
    %vm50 = vcmask 7168
    %51 = vst.msk [vmem:[%s3] sm:$0xff] %vm50, %v47
    %52 = vst.msk [vmem:[%s3 + $0x8] sm:$0xff] %vm50, %v48
    %53 = vst.msk [vmem:[%s3 + $0x10] sm:$0xff] %vm50, %v49
    %v54 = vmul.f32 %v28, %v47
    %v55 = vmul.f32 %v29, %v48
    %v56 = vmul.f32 %v30, %v49
    %57 = vst [vmem:[#allocation5] sm:$0xff] %v54
    %58 = vst [vmem:[#allocation5 + $0x8] sm:$0xff] %v55
    %59 = vst [vmem:[#allocation5 + $0x10] sm:$0xff] %v56
    // Predicated region
    $region14: #{tpu_custom_call.1} parent=1 // pred_check
      _
    $region15: #{tpu_custom_call.1} parent=1 // pred_check_branch
      %61 = sbr.rel (0) target = $region17
    $region16: #{tpu_custom_call.1} parent=1 // pred_region
      %s63 = ssub.s32 384, 384
      %64 = vsyncadd [#allocation4], %s63
      %s65 = sshll.u32 [#allocation5], 4
      %s66 = int_to_ptr.vmem [resolvable:$true] %s65
      %71 = dma.vmem_to_hbm [thread:$0]  %s66, 384, %s2, [#allocation4], 128, 128, 8
    $region17: #{tpu_custom_call.1} parent=1 // pred_fallthru
      _
    // Predicated region
    $region18: #{tpu_custom_call.1} parent=1 // pred_check
      _
    $region19: #{tpu_custom_call.1} parent=1 // pred_check_branch
      %73 = sbr.rel (0) target = $region21
    $region20: #{tpu_custom_call.1} parent=1 // pred_region
      _
    $region21: #{tpu_custom_call.1} parent=1 // pred_fallthru
      _
    // Predicated region
    $region22: #{tpu_custom_call.1} parent=1 // pred_check
      _
    $region23: #{tpu_custom_call.1} parent=1 // pred_check_branch
      %75 = sbr.rel (0) target = $region25
    $region24: #{tpu_custom_call.1} parent=1 // pred_region
      %76 = dma.done [#allocation4], 384
    $region25: #{tpu_custom_call.1} parent=1 // pred_fallthru
      _
    // Predicated region
    $region26: #{tpu_custom_call.1} parent=1 // pred_check
      _
    $region27: #{tpu_custom_call.1} parent=1 // pred_check_branch
      %78 = sbr.rel (0) target = $region29
    $region28: #{tpu_custom_call.1} parent=1 // pred_region
      _
    $region29: #{tpu_custom_call.1} parent=1 // pred_fallthru
      _
    %79 = vsyncpa [#allocation3], 1
    %80 = vsyncpa [#allocation4], 1

</llo_original>
